<compile_context>
chip_gen: v6e
topology: v6e:2x2x1
jax: 0.10.0
libtpu: 0.0.40
codegen_flags: <defaults>
</compile_context>

<pallas_src>
import functools

import jax
import jax.numpy as jnp
from jax.experimental import pallas as pl
from jax.experimental.pallas import tpu as pltpu


def _focal_kernel(*refs, gamma, use_alpha, size_average, total_rows, hw):
    if use_alpha:
        x_ref, t_ref, a_ref, o_ref, acc_ref = refs
    else:
        x_ref, t_ref, o_ref, acc_ref = refs
        a_ref = None

    n = pl.program_id(0)
    j = pl.program_id(1)
    n_hw = pl.num_programs(1)
    step = n * n_hw + j
    last_step = pl.num_programs(0) * n_hw - 1

    @pl.when(step == 0)
    def _():
        acc_ref[...] = jnp.zeros_like(acc_ref)

    x = x_ref[0].astype(jnp.float32)          # (C, tile_hw): classes on sublanes
    t = t_ref[0]                              # (1, tile_hw) int32
    C, tile_hw = x.shape

    # log_softmax over the class (sublane) axis; pixels stay lane-parallel.
    m = jnp.max(x, axis=0, keepdims=True)                                  # (1, tile_hw)
    lse = jnp.log(jnp.sum(jnp.exp(x - m), axis=0, keepdims=True)) + m      # (1, tile_hw)

    cls = jax.lax.broadcasted_iota(jnp.int32, (C, tile_hw), 0)
    onehot = cls == t                                                      # (C, tile_hw)

    # Gather logit at the target class, then logpt = x[t] - logsumexp.
    x_t = jnp.sum(jnp.where(onehot, x, 0.0), axis=0, keepdims=True)        # (1, tile_hw)
    logpt = x_t - lse
    pt = jnp.exp(logpt)

    if use_alpha:
        at = jnp.sum(jnp.where(onehot, a_ref[...], 0.0), axis=0, keepdims=True)
        logpt = logpt * at

    one_minus_pt = 1.0 - pt
    g = float(gamma)
    if g == 0.0:
        w = jnp.ones_like(pt)
    elif g == 1.0:
        w = one_minus_pt
    elif g == 2.0:
        w = one_minus_pt * one_minus_pt
    else:
        w = one_minus_pt ** g

    loss = -(w * logpt)                                                    # (1, tile_hw)

    # Mask padded lanes of the (possibly partial) last spatial block.
    lane = jax.lax.broadcasted_iota(jnp.int32, (1, tile_hw), 1)
    valid = (j * tile_hw + lane) < hw
    loss = jnp.where(valid, loss, 0.0)

    # Lane-parallel partial sums; no per-step cross-lane reduction.
    acc_ref[...] += loss

    @pl.when(step == last_step)
    def _():
        s = jnp.sum(acc_ref[...])
        if size_average:
            s = s / jnp.float32(total_rows)
        o_ref[...] = jnp.zeros_like(o_ref) + s


def focal_loss_pallas(logits_nchw, target_nhw, *, gamma=0.0, alpha=None,
                      size_average=True, block_bytes=2 * 1024 * 1024):
    """Focal loss matching the PyTorch FocalLoss.forward semantics.

    logits_nchw: (N, C, H, W) float
    target_nhw : (N, H, W) integer class indices
    alpha      : None, scalar, or length-C list of per-class weights
    """
    N, C, H, W = logits_nchw.shape
    HW = H * W
    M = N * HW

    # Free reshapes only (no transpose, no extra HBM pass).
    x = logits_nchw.reshape(N, C, HW)
    t = target_nhw.reshape(N, 1, HW).astype(jnp.int32)

    # Mirror the PyTorch module's alpha handling.
    if isinstance(alpha, (float, int)):
        alpha = [float(alpha), 1.0 - float(alpha)]
    use_alpha = alpha is not None

    # Lane-dense spatial tile: aim for ~block_bytes of (logits + target) per
    # grid step, multiple of 128 lanes, capped at the (128-rounded) extent.
    hw_pad = ((HW + 127) // 128) * 128
    tile_hw = block_bytes // (4 * (C + 1))
    tile_hw = max(128, min(tile_hw, hw_pad))
    tile_hw = (tile_hw // 128) * 128

    grid = (N, pl.cdiv(HW, tile_hw))

    kernel = functools.partial(
        _focal_kernel,
        gamma=float(gamma),
        use_alpha=use_alpha,
        size_average=size_average,
        total_rows=M,
        hw=HW,
    )

    in_specs = [
        pl.BlockSpec((1, C, tile_hw), lambda n, j: (n, 0, j)),   # logits tile
        pl.BlockSpec((1, 1, tile_hw), lambda n, j: (n, 0, j)),   # target tile
    ]
    args = [x, t]
    if use_alpha:
        a = jnp.asarray(alpha, dtype=jnp.float32).reshape(C, 1)
        in_specs.append(pl.BlockSpec((C, 1), lambda n, j: (0, 0)))  # tiny resident table
        args.append(a)

    cost = pl.CostEstimate(
        flops=10 * M * C,
        transcendentals=M * (C + 2),
        bytes_accessed=4 * M * C + 4 * M + 4,
    )

    out = pl.pallas_call(
        kernel,
        out_shape=jax.ShapeDtypeStruct((1, 1), jnp.float32),
        grid_spec=pltpu.PrefetchScalarGridSpec(
            num_scalar_prefetch=0,
            grid=grid,
            in_specs=in_specs,
            out_specs=pl.BlockSpec((1, 1), lambda n, j: (0, 0)),
            scratch_shapes=[pltpu.VMEM((1, tile_hw), jnp.float32)],
        ),
        compiler_params=pltpu.CompilerParams(
            dimension_semantics=("arbitrary", "arbitrary"),
            vmem_limit_bytes=32 * 1024 * 1024,
        ),
        cost_estimate=cost,
    )(*args)
    return out[0, 0]


def focal_loss_ref(logits_nchw, target_nhw, *, gamma=0.0, alpha=None,
                   size_average=True):
    """Pure-JAX reference mirroring the PyTorch forward."""
    N, C, H, W = logits_nchw.shape
    x = jnp.transpose(logits_nchw.reshape(N, C, H * W), (0, 2, 1)).reshape(-1, C)
    x = x.astype(jnp.float32)
    t = target_nhw.reshape(-1).astype(jnp.int32)
    logp = jax.nn.log_softmax(x, axis=-1)
    logpt = jnp.take_along_axis(logp, t[:, None], axis=-1)[:, 0]
    pt = jnp.exp(logpt)
    if alpha is not None:
        if isinstance(alpha, (float, int)):
            alpha = [float(alpha), 1.0 - float(alpha)]
        a = jnp.asarray(alpha, dtype=jnp.float32)
        logpt = logpt * a[t]
    loss = -((1.0 - pt) ** float(gamma)) * logpt
    return loss.mean() if size_average else loss.sum()


if __name__ == "__main__":
    key = jax.random.PRNGKey(0)
    k1, k2, k3, k4 = jax.random.split(key, 4)

    # Case 1: segmentation-style NCHW logits, per-class alpha, mean reduction.
    N, C, H, W = 2, 4, 16, 16
    logits = jax.random.normal(k1, (N, C, H, W), dtype=jnp.float32)
    target = jax.random.randint(k2, (N, H, W), 0, C, dtype=jnp.int32)
    gamma = 2.0
    alpha = [0.25, 0.75, 0.5, 0.5]
    out1 = focal_loss_pallas(logits, target, gamma=gamma, alpha=alpha,
                             size_average=True)
    ref1 = focal_loss_ref(logits, target, gamma=gamma, alpha=alpha,
                          size_average=True)

    # Case 2: no alpha, sum reduction, spatial size not a multiple of 128
    # (exercises the tail-masking path instead of the old divisibility assert).
    N2, C2, H2, W2 = 2, 4, 10, 10
    logits2 = jax.random.normal(k3, (N2, C2, H2, W2), dtype=jnp.float32)
    target2 = jax.random.randint(k4, (N2, H2, W2), 0, C2, dtype=jnp.int32)
    out2 = focal_loss_pallas(logits2, target2, gamma=0.0, alpha=None,
                             size_average=False)
    ref2 = focal_loss_ref(logits2, target2, gamma=0.0, alpha=None,
                          size_average=False)

    out1, out2 = jax.block_until_ready((out1, out2))
    assert jnp.allclose(out1, ref1, rtol=1e-5, atol=1e-5), (out1, ref1)
    assert jnp.allclose(out2, ref2, rtol=1e-5, atol=1e-5), (out2, ref2)

    print("KERNEL_OK")
</pallas_src>

<mosaic_0001>
module attributes {stable_mosaic.version = 11 : i64} {
  func.func @_focal_kernel(%arg0: i32, %arg1: i32, %arg2: memref<1x4x256xf32, #tpu.memory_space<vmem>>, %arg3: memref<1x1x256xi32, #tpu.memory_space<vmem>>, %arg4: memref<4x1xf32, #tpu.memory_space<vmem>>, %arg5: memref<1x1xf32, #tpu.memory_space<vmem>>, %arg6: memref<1x256xf32, #tpu.memory_space<vmem>>) attributes {dimension_semantics = [#tpu.dimension_semantics<arbitrary>, #tpu.dimension_semantics<arbitrary>], iteration_bounds = array<i64: 2, 1>, scalar_prefetch = 0 : i64, scratch_operands = 1 : i64, tpu.core_type = #tpu.core_type<tc>, window_params = [{transform_indices = @transform_0, window_bounds = array<i64: 1, 4, 256>}, {transform_indices = @transform_1, window_bounds = array<i64: 1, 1, 256>}, {pipeline_mode = #tpu.pipeline_mode<synchronous>, transform_indices = @transform_2, window_bounds = array<i64: 4, 1>}, {pipeline_mode = #tpu.pipeline_mode<synchronous>, transform_indices = @transform_3, window_bounds = array<i64: 1, 1>}]} {
    %c1_i32 = arith.constant 1 : i32
    %0 = arith.muli %arg0, %c1_i32 : i32
    %1 = arith.addi %0, %arg1 : i32
    %c0_i32 = arith.constant 0 : i32
    %2 = arith.cmpi eq, %1, %c0_i32 : i32
    %3 = arith.extui %2 : i1 to i32
    %c0_i32_0 = arith.constant 0 : i32
    %4 = arith.cmpi ne, %3, %c0_i32_0 : i32
    scf.if %4 {
      %cst_23 = arith.constant 0.000000e+00 : f32
      %55 = vector.broadcast %cst_23 : f32 to vector<1x256xf32>
      %c0_24 = arith.constant 0 : index
      %c0_25 = arith.constant 0 : index
      %56 = vector.load %arg6[%c0_24, %c0_25] : memref<1x256xf32, #tpu.memory_space<vmem>>, vector<1x256xf32>
      tpu.vector_store %arg6[%c0_24, %c0_25], %55 {strides = array<i32>} : memref<1x256xf32, #tpu.memory_space<vmem>>, vector<1x256xf32>,
    } else {
    }
    %c0 = arith.constant 0 : index
    %c0_1 = arith.constant 0 : index
    %c0_2 = arith.constant 0 : index
    %5 = vector.load %arg2[%c0, %c0_1, %c0_2] : memref<1x4x256xf32, #tpu.memory_space<vmem>>, vector<1x4x256xf32>
    %6 = vector.shape_cast %5 : vector<1x4x256xf32> to vector<4x256xf32>
    %c0_3 = arith.constant 0 : index
    %c0_4 = arith.constant 0 : index
    %c0_5 = arith.constant 0 : index
    %7 = vector.load %arg3[%c0_3, %c0_4, %c0_5] : memref<1x1x256xi32, #tpu.memory_space<vmem>>, vector<1x1x256xi32>
    %8 = vector.shape_cast %7 : vector<1x1x256xi32> to vector<1x256xi32>
    %cst = arith.constant dense<0xFF800000> : vector<256xf32>
    %9 = vector.multi_reduction <maximumf>, %6, %cst [0] : vector<4x256xf32> to vector<256xf32>
    %10 = vector.shape_cast %9 : vector<256xf32> to vector<1x256xf32>
    %11 = vector.broadcast %10 : vector<1x256xf32> to vector<4x256xf32>
    %12 = arith.subf %6, %11 : vector<4x256xf32>
    %13 = math.exp %12 : vector<4x256xf32>
    %cst_6 = arith.constant dense<0.000000e+00> : vector<256xf32>
    %14 = vector.multi_reduction <add>, %13, %cst_6 [0] : vector<4x256xf32> to vector<256xf32>
    %15 = vector.shape_cast %14 : vector<256xf32> to vector<1x256xf32>
    %16 = math.log %15 : vector<1x256xf32>
    %17 = arith.addf %16, %10 : vector<1x256xf32>
    %18 = tpu.iota {dimensions = array<i32: 0>} : vector<4x256xi32>
    %19 = vector.broadcast %8 : vector<1x256xi32> to vector<4x256xi32>
    %20 = arith.cmpi eq, %18, %19 : vector<4x256xi32>
    %cst_7 = arith.constant 0.000000e+00 : f32
    %21 = vector.broadcast %cst_7 : f32 to vector<4x256xf32>
    %22 = arith.select %20, %6, %21 : vector<4x256xi1>, vector<4x256xf32>
    %cst_8 = arith.constant dense<0.000000e+00> : vector<256xf32>
    %23 = vector.multi_reduction <add>, %22, %cst_8 [0] : vector<4x256xf32> to vector<256xf32>
    %24 = vector.shape_cast %23 : vector<256xf32> to vector<1x256xf32>
    %25 = arith.subf %24, %17 : vector<1x256xf32>
    %26 = math.exp %25 : vector<1x256xf32>
    %c0_9 = arith.constant 0 : index
    %c0_10 = arith.constant 0 : index
    %27 = vector.load %arg4[%c0_9, %c0_10] : memref<4x1xf32, #tpu.memory_space<vmem>>, vector<4x1xf32>
    %cst_11 = arith.constant 0.000000e+00 : f32
    %28 = vector.shape_cast %27 : vector<4x1xf32> to vector<4x1xf32>
    %29 = vector.broadcast %28 : vector<4x1xf32> to vector<4x256xf32>
    %30 = vector.broadcast %cst_11 : f32 to vector<4x256xf32>
    %31 = arith.select %20, %29, %30 : vector<4x256xi1>, vector<4x256xf32>
    %cst_12 = arith.constant dense<0.000000e+00> : vector<256xf32>
    %32 = vector.multi_reduction <add>, %31, %cst_12 [0] : vector<4x256xf32> to vector<256xf32>
    %33 = vector.shape_cast %32 : vector<256xf32> to vector<1x256xf32>
    %34 = arith.mulf %25, %33 : vector<1x256xf32>
    %cst_13 = arith.constant 1.000000e+00 : f32
    %35 = vector.broadcast %cst_13 : f32 to vector<1x256xf32>
    %36 = arith.subf %35, %26 : vector<1x256xf32>
    %37 = arith.mulf %36, %36 : vector<1x256xf32>
    %38 = arith.mulf %37, %34 : vector<1x256xf32>
    %cst_14 = arith.constant 0.000000e+00 : f32
    %39 = vector.broadcast %cst_14 : f32 to vector<1x256xf32>
    %40 = arith.subf %39, %38 : vector<1x256xf32>
    %41 = tpu.iota {dimensions = array<i32: 1>} : vector<1x256xi32>
    %c256_i32 = arith.constant 256 : i32
    %42 = arith.muli %arg1, %c256_i32 : i32
    %43 = vector.broadcast %42 : i32 to vector<1x256xi32>
    %44 = arith.addi %43, %41 : vector<1x256xi32>
    %c256_i32_15 = arith.constant 256 : i32
    %45 = vector.broadcast %c256_i32_15 : i32 to vector<1x256xi32>
    %46 = arith.cmpi slt, %44, %45 : vector<1x256xi32>
    %cst_16 = arith.constant 0.000000e+00 : f32
    %47 = vector.broadcast %cst_16 : f32 to vector<1x256xf32>
    %48 = arith.select %46, %40, %47 : vector<1x256xi1>, vector<1x256xf32>
    %c0_17 = arith.constant 0 : index
    %c0_18 = arith.constant 0 : index
    %49 = vector.load %arg6[%c0_17, %c0_18] : memref<1x256xf32, #tpu.memory_space<vmem>>, vector<1x256xf32>
    %50 = arith.addf %49, %48 : vector<1x256xf32>
    %c0_19 = arith.constant 0 : index
    %c0_20 = arith.constant 0 : index
    %51 = vector.load %arg6[%c0_19, %c0_20] : memref<1x256xf32, #tpu.memory_space<vmem>>, vector<1x256xf32>
    tpu.vector_store %arg6[%c0_19, %c0_20], %50 {strides = array<i32>} : memref<1x256xf32, #tpu.memory_space<vmem>>, vector<1x256xf32>,
    %c1_i32_21 = arith.constant 1 : i32
    %52 = arith.cmpi eq, %1, %c1_i32_21 : i32
    %53 = arith.extui %52 : i1 to i32
    %c0_i32_22 = arith.constant 0 : i32
    %54 = arith.cmpi ne, %53, %c0_i32_22 : i32
    scf.if %54 {
      %c0_23 = arith.constant 0 : index
      %c0_24 = arith.constant 0 : index
      %55 = vector.load %arg6[%c0_23, %c0_24] : memref<1x256xf32, #tpu.memory_space<vmem>>, vector<1x256xf32>
      %56 = vector.shape_cast %55 : vector<1x256xf32> to vector<1x1x256xf32>
      %cst_25 = arith.constant dense<0.000000e+00> : vector<1xf32>
      %57 = vector.multi_reduction <add>, %56, %cst_25 [1, 2] : vector<1x1x256xf32> to vector<1xf32>
      %58 = vector.shape_cast %57 : vector<1xf32> to vector<1x1x1xf32>
      %59 = vector.extract %58[0, 0, 0] : f32 from vector<1x1x1xf32>
      %cst_26 = arith.constant 5.120000e+02 : f32
      %60 = arith.divf %59, %cst_26 : f32
      %cst_27 = arith.constant 0.000000e+00 : f32
      %61 = vector.broadcast %cst_27 : f32 to vector<1x1xf32>
      %62 = vector.broadcast %60 : f32 to vector<1x1xf32>
      %63 = arith.addf %61, %62 : vector<1x1xf32>
      %c0_28 = arith.constant 0 : index
      %c0_29 = arith.constant 0 : index
      %64 = vector.load %arg5[%c0_28, %c0_29] : memref<1x1xf32, #tpu.memory_space<vmem>>, vector<1x1xf32>
      tpu.vector_store %arg5[%c0_28, %c0_29], %63 {strides = array<i32>} : memref<1x1xf32, #tpu.memory_space<vmem>>, vector<1x1xf32>,
    } else {
    }
    return
  }
  func.func @transform_0(%arg0: i32, %arg1: i32) -> (i32, i32, i32) {
    %c0_i32 = arith.constant 0 : i32
    %c0_i32_0 = arith.constant 0 : i32
    return %arg0, %c0_i32, %arg1 : i32, i32, i32
  }
  func.func @transform_1(%arg0: i32, %arg1: i32) -> (i32, i32, i32) {
    %c0_i32 = arith.constant 0 : i32
    %c0_i32_0 = arith.constant 0 : i32
    return %arg0, %c0_i32, %arg1 : i32, i32, i32
  }
  func.func @transform_2(%arg0: i32, %arg1: i32) -> (i32, i32) {
    %c0_i32 = arith.constant 0 : i32
    %c0_i32_0 = arith.constant 0 : i32
    %c0_i32_1 = arith.constant 0 : i32
    return %c0_i32, %c0_i32_0 : i32, i32
  }
  func.func @transform_3(%arg0: i32, %arg1: i32) -> (i32, i32) {
    %c0_i32 = arith.constant 0 : i32
    %c0_i32_0 = arith.constant 0 : i32
    %c0_i32_1 = arith.constant 0 : i32
    return %c0_i32, %c0_i32_0 : i32, i32
  }
}

</mosaic_0001>

<llo_original>
// kernel: tpu_custom_call.1
$region0: #{tpu_custom_call.1}
  #allocation0 [shape = 'u32[]', space=smem, size = 0x4, offset = 0x4, fixed_abs, tag = 'smem constant byte address 0x4 - core index']
  #allocation1 [shape = 'u32[144,128]{1,0:T(1,128)}', space=vmem, size = 0x12000, scoped, tag = 'internal scratch']
  #allocation2 [shape = 'f32[1,256]{1,0:T(1,128)}', space=vmem, size = 0x400, scoped, tag = 'scratch operand']
  %s0 = inlined_call_operand.hbm [shape: f32[2,4,256], index: 0, kind: input, shape index: {}]
  %s1 = inlined_call_operand.vmem [shape: s32[2,1,256], index: 1, kind: input, shape index: {}]
  %s2 = inlined_call_operand.vmem [shape: f32[4,1], index: 2, kind: input, shape index: {}]
  %s3 = inlined_call_operand.hbm [shape: f32[1,1], index: 3, kind: output, shape index: {}]
  %s4 = sld [smem:[#allocation0]]
  $region57: #{tpu_custom_call.1} parent=0
    _
  %s6 = ssub.s32 1, %s4
  %s7 = scalar_select 0, %s6, %s4
  $region1: #{tpu_custom_call.1} parent=0
    #allocation3 [shape = 'u8[8192]{0}', space=vmem, size = 0x2000, scoped, tag = 'input window, operand 0']
    #allocation4 [shape = 's32[2]{0}', space=sflag, size = 0x8, scoped, tag = 'scoped memory for tpu_custom_call.1']
    #allocation5 [shape = 's32[2]{0}', space=sflag, size = 0x8, scoped, tag = 'scoped memory for tpu_custom_call.1']
    #allocation6 [shape = 'u8[512]{0}', space=vmem, size = 0x400, scoped, tag = 'output window, operand 0, single buffered']
    %8 = vsyncpa [#allocation4], 0
    %s9 = scalar_lea.sflag [#allocation4], 1
    %10 = vsyncpa %s9, 0
    %11 = vsyncpa [#allocation5], 0
    loop: start=0, step=1, limit=4
    $region2: #{tpu_custom_call.1} parent=1 // loop_pre_header
      _
    $region3: #{tpu_custom_call.1} parent=1 // loop_header
      %s13 = sphi 0, %s17
      %p14 = scmp.ge.s32.totalorder %s13, 4
      %s20 = sphi 0, %s32
      %s21 = sphi 0, %s28
      %s22 = sphi 0, %s20
      %s23 = sphi 0, %s21
      %s24 = sphi 0, %s22
      %s25 = sphi 0, %s23
      %s37 = sphi 0, %s39
      %s40 = sphi 0, %s37
      %s41 = sphi 0, %s40
      %s57 = sphi 0, %s41
      %s65 = sphi 0, %s67
      %s68 = sphi 0, %s65
      %s69 = sphi 0, %s68
      %s85 = sphi 0, %s69
      %s89 = sphi 0, %s89
      %s91 = sphi 0, %s89
      %s92 = sphi 0, %s91
      %s106 = sphi 0, %s92
      %s110 = sphi 0, %s110
      %s112 = sphi 0, %s110
      %s113 = sphi 0, %s112
      %s127 = sphi 0, %s113
    $region4: #{tpu_custom_call.1} parent=1 // loop_header_branch
      %16 = sbr.rel (%p14) target = $region8
    $region5: #{tpu_custom_call.1} parent=1 // loop_body
      %s18 = ssub.s32 %s13, 1
      %s19 = ssub.s32 %s13, 2
      %s26 = sadd.s32 1, %s21
      %p27 = scmp.ge.s32.totalorder %s26, 1
      %s28 = scalar_select %p27, 0, %s26
      %s29 = sadd.s32 1, %s20
      %s30 = scalar_select %p27, %s29, %s20
      %p31 = scmp.ge.s32.totalorder %s30, 2
      %s32 = scalar_select %p31, 0, %s30
      %s33 = ssub.s32 %s20, %s32
      %s34 = ssub.s32 %s21, %s28
      %s35 = sor.u32 %s33, %s34
      %p36 = scmp.eq.s32.totalorder %s35, 0
      %s38 = sadd.s32 %s37, 1
      %s39 = scalar_select %p36, %s37, %s38
      %p42 = pneg %p36
      %p43 = scmp.eq.s32.totalorder %s13, 1
      %p44 = por %p42, %p43
      %p45 = scmp.ne.s32.totalorder %s37, %s40
      %p46 = scmp.eq.s32.totalorder %s13, 0
      %p47 = por %p45, %p46
      %p48 = scmp.ne.s32.totalorder %s37, %s40
      %p49 = scmp.eq.s32.totalorder %s18, 1
      %p50 = por %p48, %p49
      %p51 = scmp.ne.s32.totalorder %s40, %s41
      %p52 = scmp.eq.s32.totalorder %s18, 0
      %p53 = por %p51, %p52
      %p54 = scmp.ne.s32.totalorder %s40, %s41
      %p55 = scmp.eq.s32.totalorder %s19, 1
      %p56 = por %p54, %p55
      %p58 = scmp.ne.s32.totalorder %s41, %s57
      %p59 = scmp.eq.s32.totalorder %s19, 0
      %p60 = por %p58, %p59
      %s61 = ssub.s32 %s20, %s32
      %s62 = ssub.s32 %s21, %s28
      %s63 = sor.u32 %s61, %s62
      %p64 = scmp.eq.s32.totalorder %s63, 0
      %s66 = sadd.s32 %s65, 1
      %s67 = scalar_select %p64, %s65, %s66
      %p70 = pneg %p64
      %p71 = scmp.eq.s32.totalorder %s13, 1
      %p72 = por %p70, %p71
      %p73 = scmp.ne.s32.totalorder %s65, %s68
      %p74 = scmp.eq.s32.totalorder %s13, 0
      %p75 = por %p73, %p74
      %p76 = scmp.ne.s32.totalorder %s65, %s68
      %p77 = scmp.eq.s32.totalorder %s18, 1
      %p78 = por %p76, %p77
      %p79 = scmp.ne.s32.totalorder %s68, %s69
      %p80 = scmp.eq.s32.totalorder %s18, 0
      %p81 = por %p79, %p80
      %p82 = scmp.ne.s32.totalorder %s68, %s69
      %p83 = scmp.eq.s32.totalorder %s19, 1
      %p84 = por %p82, %p83
      %p86 = scmp.ne.s32.totalorder %s69, %s85
      %p87 = scmp.eq.s32.totalorder %s19, 0
      %p88 = por %p86, %p87
      %s90 = sadd.s32 %s89, 1
      %p93 = scmp.eq.s32.totalorder %s13, 1
      %p94 = scmp.ne.s32.totalorder %s89, %s91
      %p95 = scmp.eq.s32.totalorder %s13, 0
      %p96 = por %p94, %p95
      %p97 = scmp.ne.s32.totalorder %s89, %s91
      %p98 = scmp.eq.s32.totalorder %s18, 1
      %p99 = por %p97, %p98
      %p100 = scmp.ne.s32.totalorder %s91, %s92
      %p101 = scmp.eq.s32.totalorder %s18, 0
      %p102 = por %p100, %p101
      %p103 = scmp.ne.s32.totalorder %s91, %s92
      %p104 = scmp.eq.s32.totalorder %s19, 1
      %p105 = por %p103, %p104
      %p107 = scmp.ne.s32.totalorder %s92, %s106
      %p108 = scmp.eq.s32.totalorder %s19, 0
      %p109 = por %p107, %p108
      %s111 = sadd.s32 %s110, 1
      %p114 = scmp.eq.s32.totalorder %s13, 1
      %p115 = scmp.ne.s32.totalorder %s110, %s112
      %p116 = scmp.eq.s32.totalorder %s13, 0
      %p117 = por %p115, %p116
      %p118 = scmp.ne.s32.totalorder %s110, %s112
      %p119 = scmp.eq.s32.totalorder %s18, 1
      %p120 = por %p118, %p119
      %p121 = scmp.ne.s32.totalorder %s112, %s113
      %p122 = scmp.eq.s32.totalorder %s18, 0
      %p123 = por %p121, %p122
      %p124 = scmp.ne.s32.totalorder %s112, %s113
      %p125 = scmp.eq.s32.totalorder %s19, 1
      %p126 = por %p124, %p125
      %p128 = scmp.ne.s32.totalorder %s113, %s127
      %p129 = scmp.eq.s32.totalorder %s19, 0
      %p130 = por %p128, %p129
      %p131 = scmp.le.s32.totalorder 1, %s13
      %p132 = scmp.lt.s32.totalorder %s13, 3
      %p133 = pnand %p131, %p132
      %p134 = pneg %p133
      // Predicated region
      $region9: #{tpu_custom_call.1} parent=5 // pred_check
        _
      $region10: #{tpu_custom_call.1} parent=5 // pred_check_branch
        %136 = sbr.rel (%p133) target = $region12
      $region11: #{tpu_custom_call.1} parent=5 // pred_region
        %s137 = ssub.s32 %s13, 1
        // Predicated region
        $region13: #{tpu_custom_call.1} parent=11 // pred_check
          %p138 = pneg %p102
        $region14: #{tpu_custom_call.1} parent=11 // pred_check_branch
          %140 = sbr.rel (%p138) target = $region16
        $region15: #{tpu_custom_call.1} parent=11 // pred_region
          _
        $region16: #{tpu_custom_call.1} parent=11 // pred_fallthru
          _
      $region12: #{tpu_custom_call.1} parent=5 // pred_fallthru
        _
      %p141 = scmp.lt.s32.totalorder %s13, 2
      // Predicated region
      $region17: #{tpu_custom_call.1} parent=5 // pred_check
        %p142 = pneg %p141
      $region18: #{tpu_custom_call.1} parent=5 // pred_check_branch
        %144 = sbr.rel (%p142) target = $region20
      $region19: #{tpu_custom_call.1} parent=5 // pred_region
        // Predicated region
        $region21: #{tpu_custom_call.1} parent=19 // pred_check
          %p145 = pneg %p47
        $region22: #{tpu_custom_call.1} parent=19 // pred_check_branch
          %147 = sbr.rel (%p145) target = $region24
        $region23: #{tpu_custom_call.1} parent=19 // pred_region
          %s148 = sand.u32 %s37, 1
          %s149 = scalar_lea.sflag [#allocation4], %s148
          %s150 = sand.u32 %s37, 1
          %s151 = smul.addr %s150, 8
          %s152 = scalar_lea.vmem [#allocation3], %s151
          %s153 = smul.u32 2, %s21
          %s155 = ssub.s32 128, 128
          %156 = vsyncadd %s149, %s155
          %s157 = smul.addr %s20, 2
          %s158 = sadd.s32 %s153, %s157
          %s159 = smul.addr %s158, 64
          %s160 = scalar_lea.hbm %s0, %s159
          %s162 = sshll.u32 %s152, 4
          %s163 = int_to_ptr.vmem [resolvable:$true] %s162
          %165 = dma.hbm_to_vmem [thread:$0]  %s160, 128, %s163, %s149
        $region24: #{tpu_custom_call.1} parent=19 // pred_fallthru
          _
        // Predicated region
        $region25: #{tpu_custom_call.1} parent=19 // pred_check
          %p166 = pneg %p75
        $region26: #{tpu_custom_call.1} parent=19 // pred_check_branch
          %168 = sbr.rel (%p166) target = $region28
        $region27: #{tpu_custom_call.1} parent=19 // pred_region
          %s169 = smul.u32 2, %s21
          %p170 = scmp.lt.s32.totalorder %s20, 1
          %s171 = scalar_select %p170, %s20, 1
          %p172 = scmp.lt.s32.totalorder %s169, 1
          %s173 = scalar_select %p172, %s169, 1
          %s174 = smul.addr %s171, 2
          %s175 = sadd.s32 %s173, %s174
          %s176 = scalar_lea.vmem %s1, %s175
          %s177 = smul.u32 2, %s21
        $region28: #{tpu_custom_call.1} parent=19 // pred_fallthru
          _
      $region20: #{tpu_custom_call.1} parent=5 // pred_fallthru
        _
      %p178 = scmp.le.s32.totalorder 1, %s13
      %p179 = scmp.lt.s32.totalorder %s13, 3
      %p180 = pnand %p178, %p179
      %p181 = pneg %p180
      // Predicated region
      $region29: #{tpu_custom_call.1} parent=5 // pred_check
        _
      $region30: #{tpu_custom_call.1} parent=5 // pred_check_branch
        %183 = sbr.rel (%p180) target = $region32
      $region31: #{tpu_custom_call.1} parent=5 // pred_region
        %s184 = ssub.s32 %s13, 1
        %s185 = sand.u32 %s40, 1
        %s186 = scalar_lea.sflag [#allocation4], %s185
        %s187 = sand.u32 %s40, 1
        %s188 = smul.addr %s187, 8
        %s189 = scalar_lea.vmem [#allocation3], %s188
        // Predicated region
        $region33: #{tpu_custom_call.1} parent=31 // pred_check
          %p190 = pneg %p53
        $region34: #{tpu_custom_call.1} parent=31 // pred_check_branch
          %192 = sbr.rel (%p190) target = $region36
        $region35: #{tpu_custom_call.1} parent=31 // pred_region
          %193 = dma.done %s186, 128
        $region36: #{tpu_custom_call.1} parent=31 // pred_fallthru
          _
        %s194 = sand.u32 %s40, 1
        %s195 = scalar_lea.sflag [#allocation4], %s194
        %s196 = sand.u32 %s40, 1
        %s197 = smul.addr %s196, 8
        %s198 = scalar_lea.vmem [#allocation3], %s197
        %p199 = pneg %p53
        %p200 = pneg %p50
        %s201 = smul.u32 2, %s23
        %p202 = scmp.lt.s32.totalorder %s22, 1
        %s203 = scalar_select %p202, %s22, 1
        %p204 = scmp.lt.s32.totalorder %s201, 1
        %s205 = scalar_select %p204, %s201, 1
        %s206 = smul.addr %s203, 2
        %s207 = sadd.s32 %s205, %s206
        %s208 = scalar_lea.vmem %s1, %s207
        %p209 = pneg %p81
        %p210 = pneg %p78
        %p211 = pneg %p102
        %p212 = pneg %p99
        %p213 = pneg %p123
        %p214 = pneg %p120
        %s215 = smul.u32 2, %s23
        %s216 = smul.u32 2, %s23
        %p217 = scmp.lt.s32.totalorder %s22, 1
        %s218 = scalar_select %p217, %s22, 1
        %p219 = scmp.lt.s32.totalorder %s216, 1
        %s220 = scalar_select %p219, %s216, 1
        %s221 = smul.addr %s218, 2
        %s222 = sadd.s32 %s220, %s221
        %s223 = scalar_lea.vmem %s1, %s222
        %s224 = smul.u32 2, %s23
        %s225 = sadd.s32 %s22, %s23
        %p226 = scmp.eq.s32.totalorder %s225, 0
        // Predicated region
        $region37: #{tpu_custom_call.1} parent=31 // pred_check
          %p227 = pneg %p226
        $region38: #{tpu_custom_call.1} parent=31 // pred_check_branch
          %229 = sbr.rel (%p227) target = $region40
        $region39: #{tpu_custom_call.1} parent=31 // pred_region
          %v230 = vlaneseq
          %vm231 = vcmp.ge.s32.totalorder %v230, 0
          %vm232 = vcmp.lt.s32.totalorder %v230, 256
          %vm233 = vmand %vm231, %vm232
          %234 = vst.msk [vmem:[#allocation2] sm:$0x3] %vm233, 0.0
        $region40: #{tpu_custom_call.1} parent=31 // pred_fallthru
          _
        %v235 = vld [vmem:[%s189] sm:$0xff]
        %v236 = vld [vmem:[%s223] sm:$0x3]
        %v238 = vcombine.high %v235, %v235
        %vm240 = vcmask 1043456
        %v241 = vsel %vm240, %v235, -inf
        %v242 = vrot.slane %v241, 4
        %v243 = vmax.f32 %v241, %v242
        %v244 = vrot.slane %v243, 2
        %v245 = vmax.f32 %v243, %v244
        %v246 = vrot.slane %v245, 1
        %v247 = vmax.f32 %v245, %v246
        %v248 = vsel %vm240, %v238, -inf
        %v249 = vrot.slane %v248, 4
        %v250 = vmax.f32 %v248, %v249
        %v251 = vrot.slane %v250, 2
        %v252 = vmax.f32 %v250, %v251
        %v253 = vrot.slane %v252, 1
        %v254 = vmax.f32 %v252, %v253
        %v257 = vcombine.low %v247, %v254
        %v259 = vsub.f32 %v235, %v257
        %v260 = vmul.f32 %v259, 1.442695
        %v261 = vpow.pop %v260
        %v263 = vcombine.high %v261, %v261
        %v265 = vsel %vm240, %v261, 0.0
        %v266 = vrot.slane %v265, 4
        %v267 = vadd.f32 %v265, %v266
        %v268 = vrot.slane %v267, 2
        %v269 = vadd.f32 %v267, %v268
        %v270 = vrot.slane %v269, 1
        %v271 = vadd.f32 %v269, %v270
        %v272 = vsel %vm240, %v263, 0.0
        %v273 = vrot.slane %v272, 4
        %v274 = vadd.f32 %v272, %v273
        %v275 = vrot.slane %v274, 2
        %v276 = vadd.f32 %v274, %v275
        %v277 = vrot.slane %v276, 1
        %v278 = vadd.f32 %v276, %v277
        %v279 = vlog2.pop %v271
        %v280 = vmul.f32 %v279, 0.6931472
        %v281 = vlog2.pop %v278
        %v282 = vmul.f32 %v281, 0.6931472
        %v283 = vadd.f32 %v280, %v247
        %v284 = vadd.f32 %v282, %v254
        %v285 = vlaneseq
        %v286 = vshrl.u32 %v285, 7
        %v287 = vlaneseq
        %v288 = vshrl.u32 %v287, 7
        %v289 = vsub.s32 0, %v288
        %v290 = vrot.slane %v236, %v289
        %v291 = vlaneseq
        %v292 = vshrl.u32 %v291, 7
        %v293 = vsub.s32 1, %v292
        %v294 = vrot.slane %v236, %v293
        %vm295 = vcmp.eq.s32.totalorder %v286, %v290
        %vm296 = vcmp.eq.s32.totalorder %v286, %v294
        %v297 = vsel %vm295, %v235, 0.0
        %v298 = vsel %vm296, %v238, 0.0
        %v299 = vsel %vm240, %v297, 0.0
        %v300 = vrot.slane %v299, 4
        %v301 = vadd.f32 %v299, %v300
        %v302 = vrot.slane %v301, 2
        %v303 = vadd.f32 %v301, %v302
        %v304 = vrot.slane %v303, 1
        %v305 = vadd.f32 %v303, %v304
        %v306 = vsel %vm240, %v298, 0.0
        %v307 = vrot.slane %v306, 4
        %v308 = vadd.f32 %v306, %v307
        %v309 = vrot.slane %v308, 2
        %v310 = vadd.f32 %v308, %v309
        %v311 = vrot.slane %v310, 1
        %v312 = vadd.f32 %v310, %v311
        %v313 = vsub.f32 %v305, %v283
        %v314 = vsub.f32 %v312, %v284
        %v315 = vmul.f32 %v313, 1.442695
        %v316 = vpow.pop %v315
        %v317 = vmul.f32 %v314, 1.442695
        %v318 = vpow.pop %v317
        %v319 = vld [vmem:[%s2] sm:$0xf]
        %321 = vset.pattern.permute.xlu0 0
        %322 = vperm.xlu0 %321, %v319
        %v323 = vpop.permute.xlu0 %322
        %v325 = vsel %vm295, %v323, 0.0
        %v326 = vsel %vm296, %v323, 0.0
        %v327 = vsel %vm240, %v325, 0.0
        %v328 = vrot.slane %v327, 4
        %v329 = vadd.f32 %v327, %v328
        %v330 = vrot.slane %v329, 2
        %v331 = vadd.f32 %v329, %v330
        %v332 = vrot.slane %v331, 1
        %v333 = vadd.f32 %v331, %v332
        %v334 = vsel %vm240, %v326, 0.0
        %v335 = vrot.slane %v334, 4
        %v336 = vadd.f32 %v334, %v335
        %v337 = vrot.slane %v336, 2
        %v338 = vadd.f32 %v336, %v337
        %v339 = vrot.slane %v338, 1
        %v340 = vadd.f32 %v338, %v339
        %v341 = vmul.f32 %v313, %v333
        %v342 = vmul.f32 %v314, %v340
        %v343 = vsub.f32 1.0, %v316
        %v344 = vsub.f32 1.0, %v318
        %v345 = vmul.f32 %v343, %v343
        %v346 = vmul.f32 %v344, %v344
        %v347 = vmul.f32 %v345, %v341
        %v348 = vmul.f32 %v346, %v342
        %v349 = vsub.f32 0.0, %v347
        %v350 = vsub.f32 0.0, %v348
        %v351 = vlaneseq
        %v352 = vand.u32 %v351, 127
        %v353 = vadd.s32 %v352, 128
        %s354 = smul.u32 %s23, 256
        %v355 = vstv %s354
        %v356 = vadd.s32 %v355, %v352
        %v357 = vadd.s32 %v355, %v353
        %vm358 = vcmp.lt.s32.totalorder %v356, 256
        %vm359 = vcmp.lt.s32.totalorder %v357, 256
        %v360 = vsel %vm358, %v349, 0.0
        %v361 = vsel %vm359, %v350, 0.0
        %v362 = vld [vmem:[#allocation2] sm:$0x3]
        %v365 = vcombine.low %v360, %v361
        %v367 = vunpack.c.l.s4 1966171168
        %v368 = vunpack.c.0.s8 %v367
        %v369 = vlaneseq
        %v370 = vshrl.u32 %v369, 7
        %v371 = vsub.s32 %v368, %v370
        %v372 = vrot.slane %v365, %v371
        %v374 = vunpack.c.l.s4 1966171168
        %v375 = vunpack.c.0.s8 %v374
        %v376 = vlaneseq
        %v377 = vshrl.u32 %v376, 7
        %v378 = vsub.s32 %v375, %v377
        %v379 = vrot.slane %v372, %v378
        %v381 = vadd.f32 %v362, %v379
        %v382 = vlaneseq
        %vm383 = vcmp.ge.s32.totalorder %v382, 0
        %vm384 = vcmp.lt.s32.totalorder %v382, 256
        %vm385 = vmand %vm383, %vm384
        %386 = vst.msk [vmem:[#allocation2] sm:$0x3] %vm385, %v381
        %p387 = scmp.eq.s32.totalorder %s225, 1
        // Predicated region
        $region41: #{tpu_custom_call.1} parent=31 // pred_check
          %p388 = pneg %p387
        $region42: #{tpu_custom_call.1} parent=31 // pred_check_branch
          %390 = sbr.rel (%p388) target = $region44
        $region43: #{tpu_custom_call.1} parent=31 // pred_region
          %v391 = vld [vmem:[#allocation2] sm:$0x3]
          %v393 = vlaneseq
          %v394 = vshrl.u32 %v393, 7
          %v395 = vsub.s32 0, %v394
          %v396 = vrot.slane %v391, %v395
          %v397 = vlaneseq
          %v398 = vshrl.u32 %v397, 7
          %v399 = vsub.s32 1, %v398
          %v400 = vrot.slane %v391, %v399
          %vm403 = vcmask 1040384
          %v404 = vsel %vm403, %v396, 0.0
          %v405 = vsel %vm403, %v400, 0.0
          %v406 = vadd.f32 %v404, %v405
          %407 = vadd.xlane.f32.xlu0 %v406
          %v408 = vpop.xlane.xlu0 %407
          %v409 = vrot.slane %v408, 4
          %v410 = vadd.f32 %v408, %v409
          %v411 = vrot.slane %v410, 2
          %v412 = vadd.f32 %v410, %v411
          %v413 = vrot.slane %v412, 1
          %v414 = vadd.f32 %v412, %v413
          %s415 = vtos %v414
          %v416 = vrcp.pop 512.0
          %s417 = vtos %v416
          %s418 = smul.f32 %s415, %s417
          %v419 = vstv %s418
          %v420 = vadd.f32 %v419, 0.0
          %vm421 = vcmask 0
          %422 = vst.msk [vmem:[#allocation6] sm:$0x1] %vm421, %v420
        $region44: #{tpu_custom_call.1} parent=31 // pred_fallthru
          _
        // Predicated region
        $region45: #{tpu_custom_call.1} parent=31 // pred_check
          %p423 = pneg %p120
        $region46: #{tpu_custom_call.1} parent=31 // pred_check_branch
          %425 = sbr.rel (%p423) target = $region48
        $region47: #{tpu_custom_call.1} parent=31 // pred_region
          %s427 = ssub.s32 16, 16
          %428 = vsyncadd [#allocation5], %s427
          %s430 = sshll.u32 [#allocation6], 4
          %s431 = int_to_ptr.vmem [resolvable:$true] %s430
          %433 = dma.vmem_to_hbm [thread:$0]  %s431, 16, %s3, [#allocation5]
        $region48: #{tpu_custom_call.1} parent=31 // pred_fallthru
          _
        // Predicated region
        $region49: #{tpu_custom_call.1} parent=31 // pred_check
          %p434 = pneg %p120
        $region50: #{tpu_custom_call.1} parent=31 // pred_check_branch
          %436 = sbr.rel (%p434) target = $region52
        $region51: #{tpu_custom_call.1} parent=31 // pred_region
          %437 = dma.done [#allocation5], 16
        $region52: #{tpu_custom_call.1} parent=31 // pred_fallthru
          _
      $region32: #{tpu_custom_call.1} parent=5 // pred_fallthru
        _
      %p438 = scmp.le.s32.totalorder 2, %s13
      // Predicated region
      $region53: #{tpu_custom_call.1} parent=5 // pred_check
        %p439 = pneg %p438
      $region54: #{tpu_custom_call.1} parent=5 // pred_check_branch
        %441 = sbr.rel (%p439) target = $region56
      $region55: #{tpu_custom_call.1} parent=5 // pred_region
        %s442 = ssub.s32 %s13, 2
      $region56: #{tpu_custom_call.1} parent=5 // pred_fallthru
        _
    $region6: #{tpu_custom_call.1} parent=1 // loop_footer
      %s17 = sadd.s32 1, %s13
    $region7: #{tpu_custom_call.1} parent=1 // loop_footer_branch
      %12 = sbr.rel target = $region3
    $region8: #{tpu_custom_call.1} parent=1 // loop_exit
      _
    %443 = vsyncpa [#allocation4], 1
    %s444 = scalar_lea.sflag [#allocation4], 1
    %445 = vsyncpa %s444, 1
    %446 = vsyncpa [#allocation5], 1
    %s447 = scalar_lea.sflag [#allocation5], 1
    %448 = vsyncpa %s447, 1

</llo_original>
